<compile_context>
chip_gen: v5e
topology: v5e:2x2
jax: 0.10.0
libtpu: 0.0.40
codegen_flags: <defaults>
</compile_context>

<pallas_src>
import jax
import jax.numpy as jnp
import numpy as np
from jax.experimental import pallas as pl
from jax.experimental.pallas import tpu as pltpu

ACTION_DIM = 7
H1 = 64
H2 = 32
FUSED = 2 * H1          # 128: actor(64) + critic(64) fused hidden width
OUT_PAD = 128           # lane-dense output width (cols 0..6 = mean, col 7 = value)
MAX_K_TILE = 8192       # K-reduction tile cap (bf16 tile = 2 MiB / buffer)


def _round_up(x, m):
    return ((x + m - 1) // m) * m


def _tiling(state_dim):
    """Return (S_pad, K_TILE): single tile if it fits, else stream MAX_K_TILE tiles."""
    s128 = _round_up(state_dim, 128)
    if s128 <= MAX_K_TILE:
        return s128, s128
    return _round_up(state_dim, MAX_K_TILE), MAX_K_TILE


def _vmem_limit_bytes(batch, k_tile):
    """Explicit scoped-VMEM budget: double-buffered bf16 streams + resident f32 weights."""
    bf16, f32 = 2, 4
    stream = 2 * (k_tile * FUSED * bf16) + 2 * (batch * k_tile * bf16)   # w1, x (x2 buffers)
    resident = (FUSED * FUSED + FUSED * OUT_PAD) * f32 + (2 * FUSED + OUT_PAD) * f32
    out_acc = (2 * batch * OUT_PAD + batch * FUSED) * f32
    return int((stream + resident + out_acc) * 1.5) + (2 << 20)          # 50% + 2 MiB headroom


def _policy_kernel_single(
    x_ref, w1_ref, b1_ref, w2_ref, b2_ref, w3_ref, b3_ref, out_ref,
):
    """Whole padded state in one K tile: no accumulator round-trip."""
    h1 = jnp.tanh(
        jnp.dot(x_ref[...], w1_ref[...], preferred_element_type=jnp.float32) + b1_ref[...]
    )
    h2 = jnp.tanh(
        jnp.dot(h1, w2_ref[...], preferred_element_type=jnp.float32) + b2_ref[...]
    )
    out_ref[...] = (
        jnp.dot(h2, w3_ref[...], preferred_element_type=jnp.float32) + b3_ref[...]
    )


def _policy_kernel_stream(
    x_ref, w1_ref, b1_ref, w2_ref, b2_ref, w3_ref, b3_ref, out_ref, acc,
):
    """K-streaming path: accumulate layer-1 partials, finish MLP on the last step."""
    k = pl.program_id(0)

    @pl.when(k == 0)
    def _():
        # Fold b1 into the accumulator init instead of zero-fill + separate add.
        acc[...] = jnp.broadcast_to(b1_ref[...], acc.shape)

    acc[...] += jnp.dot(x_ref[...], w1_ref[...], preferred_element_type=jnp.float32)

    @pl.when(k == pl.num_programs(0) - 1)
    def _():
        h1 = jnp.tanh(acc[...])
        h2 = jnp.tanh(
            jnp.dot(h1, w2_ref[...], preferred_element_type=jnp.float32) + b2_ref[...]
        )
        out_ref[...] = (
            jnp.dot(h2, w3_ref[...], preferred_element_type=jnp.float32) + b3_ref[...]
        )


def prepare_params(p, state_dim):
    """One-time fuse + pad of the raw (torch-layout-transposed) parameters."""
    s_pad, _ = _tiling(state_dim)

    # Layer 1: concatenate actor/critic along N -> (S, 128), pad K, cast to bf16 once.
    w1 = jnp.concatenate([p["w1a"], p["w1c"]], axis=1)
    w1 = jnp.pad(w1, ((0, s_pad - state_dim), (0, 0))).astype(jnp.bfloat16)
    b1 = jnp.concatenate([p["b1a"], p["b1c"]], axis=1)

    # Layer 2: block-diagonal, zero-padded to (128, 128).
    #   cols 0..31  <- actor hidden (rows 0..63)
    #   cols 32..63 <- critic hidden (rows 64..127)
    w2 = jnp.zeros((FUSED, FUSED), jnp.float32)
    w2 = w2.at[:H1, :H2].set(p["w2a"])
    w2 = w2.at[H1:, H2:2 * H2].set(p["w2c"])
    b2 = jnp.zeros((1, FUSED), jnp.float32)
    b2 = b2.at[:, :H2].set(p["b2a"])
    b2 = b2.at[:, H2:2 * H2].set(p["b2c"])

    # Layer 3: actor rows 0..31 -> cols 0..6 (mean); critic rows 32..63 -> col 7 (value).
    w3 = jnp.zeros((FUSED, OUT_PAD), jnp.float32)
    w3 = w3.at[:H2, :ACTION_DIM].set(p["w3a"])
    w3 = w3.at[H2:2 * H2, ACTION_DIM:ACTION_DIM + 1].set(p["w3c"])
    b3 = jnp.zeros((1, OUT_PAD), jnp.float32)
    b3 = b3.at[:, :ACTION_DIM].set(p["b3a"])
    b3 = b3.at[:, ACTION_DIM:ACTION_DIM + 1].set(p["b3c"])

    return dict(w1=w1, b1=b1, w2=w2, b2=b2, w3=w3, b3=b3, log_std=p["log_std"])


def policy_forward(state, fused):
    """state: (B, S) f32.  Returns (mean[1,B,A], std[1,B,A], value[B,1])."""
    B, S = state.shape
    s_pad, k_tile = _tiling(S)
    k_tiles = s_pad // k_tile
    assert fused["w1"].shape[0] == s_pad, "params were prepared for a different state_dim"

    # Pad + bf16 cast happen inside the surrounding jit -> fused with operand prep.
    x = jnp.pad(state, ((0, 0), (0, s_pad - S))).astype(jnp.bfloat16)

    full = lambda shape: pl.BlockSpec(shape, lambda k: (0, 0))

    in_specs = [
        pl.BlockSpec((B, k_tile), lambda k: (0, k)),      # x (bf16 stream)
        pl.BlockSpec((k_tile, FUSED), lambda k: (k, 0)),  # w1 (bf16 stream, fused)
        full((1, FUSED)),                                 # b1
        full((FUSED, FUSED)), full((1, FUSED)),           # w2, b2 (resident)
        full((FUSED, OUT_PAD)), full((1, OUT_PAD)),       # w3, b3 (resident)
    ]
    out_spec = pl.BlockSpec((B, OUT_PAD), lambda k: (0, 0))

    if k_tiles == 1:
        kernel = _policy_kernel_single
        scratch = []
    else:
        kernel = _policy_kernel_stream
        scratch = [pltpu.VMEM((B, FUSED), jnp.float32)]

    out = pl.pallas_call(
        kernel,
        out_shape=jax.ShapeDtypeStruct((B, OUT_PAD), jnp.float32),
        grid_spec=pltpu.PrefetchScalarGridSpec(
            num_scalar_prefetch=0,
            grid=(k_tiles,),
            in_specs=in_specs,
            out_specs=out_spec,
            scratch_shapes=scratch,
        ),
        compiler_params=pltpu.CompilerParams(
            dimension_semantics=("arbitrary",),
            vmem_limit_bytes=_vmem_limit_bytes(B, k_tile),
        ),
    )(x, fused["w1"], fused["b1"], fused["w2"], fused["b2"], fused["w3"], fused["b3"])

    mean = out[:, :ACTION_DIM]
    value = out[:, ACTION_DIM:ACTION_DIM + 1]
    # std = log_std.exp().expand_as(mean) — state-independent, done outside the kernel.
    std = jnp.broadcast_to(jnp.exp(fused["log_std"]), mean.shape)

    # Match PyTorch forward: mean = actor(state).unsqueeze(0)
    return mean[None, ...], std[None, ...], value


def init_params(key, state_dim, action_dim):
    """Deterministic init mimicking torch.nn.Linear default (uniform +/- 1/sqrt(fan_in)),
    with weights already stored as (in_features, out_features)."""
    def linear(key, fan_in, fan_out):
        kw, kb = jax.random.split(key)
        bound = 1.0 / np.sqrt(fan_in)
        w = jax.random.uniform(kw, (fan_in, fan_out), jnp.float32, -bound, bound)
        b = jax.random.uniform(kb, (1, fan_out), jnp.float32, -bound, bound)
        return w, b

    keys = jax.random.split(key, 6)
    w1a, b1a = linear(keys[0], state_dim, H1)
    w2a, b2a = linear(keys[1], H1, H2)
    w3a, b3a = linear(keys[2], H2, action_dim)
    w1c, b1c = linear(keys[3], state_dim, H1)
    w2c, b2c = linear(keys[4], H1, H2)
    w3c, b3c = linear(keys[5], H2, 1)
    return dict(
        w1a=w1a, b1a=b1a, w2a=w2a, b2a=b2a, w3a=w3a, b3a=b3a,
        w1c=w1c, b1c=b1c, w2c=w2c, b2c=b2c, w3c=w3c, b3c=b3c,
        log_std=jnp.zeros((1, action_dim), jnp.float32),
    )


def _reference_forward(state, p, *, bf16_layer1=False):
    cast = (lambda a: a.astype(jnp.bfloat16)) if bf16_layer1 else (lambda a: a)
    h = jnp.tanh(jnp.dot(cast(state), cast(p["w1a"]),
                         preferred_element_type=jnp.float32) + p["b1a"])
    h = jnp.tanh(h @ p["w2a"] + p["b2a"])
    mean = h @ p["w3a"] + p["b3a"]
    g = jnp.tanh(jnp.dot(cast(state), cast(p["w1c"]),
                         preferred_element_type=jnp.float32) + p["b1c"])
    g = jnp.tanh(g @ p["w2c"] + p["b2c"])
    value = g @ p["w3c"] + p["b3c"]
    std = jnp.broadcast_to(jnp.exp(p["log_std"]), mean.shape)
    return mean[None, ...], std[None, ...], value


if __name__ == "__main__":
    # Small shapes consistent with Policy(state_dim, action_dim):
    # batch=2 states, a modest non-aligned state_dim to exercise K-padding.
    BATCH = 2
    STATE_DIM = 521

    key = jax.random.PRNGKey(0)
    k_params, k_state = jax.random.split(key)
    raw_params = init_params(k_params, STATE_DIM, ACTION_DIM)
    fused_params = prepare_params(raw_params, STATE_DIM)   # one-time fuse/pad/bf16-cast
    state = jax.random.normal(k_state, (BATCH, STATE_DIM), jnp.float32)

    forward = jax.jit(policy_forward)
    mean, std, value = forward(state, fused_params)
    jax.block_until_ready((mean, std, value))

    assert mean.shape == (1, BATCH, ACTION_DIM)
    assert std.shape == (1, BATCH, ACTION_DIM)
    assert value.shape == (BATCH, 1)

    # Tight check vs. a reference that uses the same bf16 layer-1 as the kernel.
    m_bf, s_bf, v_bf = _reference_forward(state, raw_params, bf16_layer1=True)
    np.testing.assert_allclose(np.asarray(mean), np.asarray(m_bf), rtol=1e-4, atol=1e-4)
    np.testing.assert_allclose(np.asarray(value), np.asarray(v_bf), rtol=1e-4, atol=1e-4)
    np.testing.assert_allclose(np.asarray(std), np.asarray(s_bf), rtol=1e-5, atol=1e-6)

    # Sanity check vs. the pure-f32 reference (looser: layer-1 weights are bf16).
    m_f32, s_f32, v_f32 = _reference_forward(state, raw_params, bf16_layer1=False)
    np.testing.assert_allclose(np.asarray(mean), np.asarray(m_f32), rtol=2e-2, atol=2e-2)
    np.testing.assert_allclose(np.asarray(value), np.asarray(v_f32), rtol=2e-2, atol=2e-2)

    print("KERNEL_OK")
</pallas_src>

<mosaic_0001>
module attributes {stable_mosaic.version = 11 : i64} {
  func.func @_policy_kernel_single(%arg0: i32, %arg1: memref<2x640xbf16, #tpu.memory_space<vmem>>, %arg2: memref<640x128xbf16, #tpu.memory_space<vmem>>, %arg3: memref<1x128xf32, #tpu.memory_space<vmem>>, %arg4: memref<128x128xf32, #tpu.memory_space<vmem>>, %arg5: memref<1x128xf32, #tpu.memory_space<vmem>>, %arg6: memref<128x128xf32, #tpu.memory_space<vmem>>, %arg7: memref<1x128xf32, #tpu.memory_space<vmem>>, %arg8: memref<2x128xf32, #tpu.memory_space<vmem>>) attributes {dimension_semantics = [#tpu.dimension_semantics<arbitrary>], iteration_bounds = array<i64: 1>, scalar_prefetch = 0 : i64, scratch_operands = 0 : i64, tpu.core_type = #tpu.core_type<tc>, window_params = [{transform_indices = @transform_0, window_bounds = array<i64: 2, 640>}, {transform_indices = @transform_1, window_bounds = array<i64: 640, 128>}, {pipeline_mode = #tpu.pipeline_mode<synchronous>, transform_indices = @transform_2, window_bounds = array<i64: 1, 128>}, {pipeline_mode = #tpu.pipeline_mode<synchronous>, transform_indices = @transform_3, window_bounds = array<i64: 128, 128>}, {pipeline_mode = #tpu.pipeline_mode<synchronous>, transform_indices = @transform_4, window_bounds = array<i64: 1, 128>}, {pipeline_mode = #tpu.pipeline_mode<synchronous>, transform_indices = @transform_5, window_bounds = array<i64: 128, 128>}, {pipeline_mode = #tpu.pipeline_mode<synchronous>, transform_indices = @transform_6, window_bounds = array<i64: 1, 128>}, {pipeline_mode = #tpu.pipeline_mode<synchronous>, transform_indices = @transform_7, window_bounds = array<i64: 2, 128>}]} {
    %c0 = arith.constant 0 : index
    %c0_0 = arith.constant 0 : index
    %0 = vector.load %arg1[%c0, %c0_0] : memref<2x640xbf16, #tpu.memory_space<vmem>>, vector<2x640xbf16>
    %c0_1 = arith.constant 0 : index
    %c0_2 = arith.constant 0 : index
    %1 = vector.load %arg2[%c0_1, %c0_2] : memref<640x128xbf16, #tpu.memory_space<vmem>>, vector<640x128xbf16>
    %cst = arith.constant dense<0.000000e+00> : vector<2x128xf32>
    %2 = tpu.matmul %0, %1, %cst {dimension_numbers = #tpu.dot_dimension_numbers<[1], [0], [0], [1], [0, 0, 1, 1], [], []>} : vector<2x640xbf16>, vector<640x128xbf16>, vector<2x128xf32> -> vector<2x128xf32>
    %c0_3 = arith.constant 0 : index
    %c0_4 = arith.constant 0 : index
    %3 = vector.load %arg3[%c0_3, %c0_4] : memref<1x128xf32, #tpu.memory_space<vmem>>, vector<1x128xf32>
    %4 = vector.broadcast %3 : vector<1x128xf32> to vector<2x128xf32>
    %5 = arith.addf %2, %4 : vector<2x128xf32>
    %6 = math.tanh %5 : vector<2x128xf32>
    %c0_5 = arith.constant 0 : index
    %c0_6 = arith.constant 0 : index
    %7 = vector.load %arg4[%c0_5, %c0_6] : memref<128x128xf32, #tpu.memory_space<vmem>>, vector<128x128xf32>
    %cst_7 = arith.constant dense<0.000000e+00> : vector<2x128xf32>
    %8 = tpu.matmul %6, %7, %cst_7 {dimension_numbers = #tpu.dot_dimension_numbers<[1], [0], [0], [1], [0, 0, 1, 1], [], []>} : vector<2x128xf32>, vector<128x128xf32>, vector<2x128xf32> -> vector<2x128xf32>
    %c0_8 = arith.constant 0 : index
    %c0_9 = arith.constant 0 : index
    %9 = vector.load %arg5[%c0_8, %c0_9] : memref<1x128xf32, #tpu.memory_space<vmem>>, vector<1x128xf32>
    %10 = vector.broadcast %9 : vector<1x128xf32> to vector<2x128xf32>
    %11 = arith.addf %8, %10 : vector<2x128xf32>
    %12 = math.tanh %11 : vector<2x128xf32>
    %c0_10 = arith.constant 0 : index
    %c0_11 = arith.constant 0 : index
    %13 = vector.load %arg6[%c0_10, %c0_11] : memref<128x128xf32, #tpu.memory_space<vmem>>, vector<128x128xf32>
    %cst_12 = arith.constant dense<0.000000e+00> : vector<2x128xf32>
    %14 = tpu.matmul %12, %13, %cst_12 {dimension_numbers = #tpu.dot_dimension_numbers<[1], [0], [0], [1], [0, 0, 1, 1], [], []>} : vector<2x128xf32>, vector<128x128xf32>, vector<2x128xf32> -> vector<2x128xf32>
    %c0_13 = arith.constant 0 : index
    %c0_14 = arith.constant 0 : index
    %15 = vector.load %arg7[%c0_13, %c0_14] : memref<1x128xf32, #tpu.memory_space<vmem>>, vector<1x128xf32>
    %16 = vector.broadcast %15 : vector<1x128xf32> to vector<2x128xf32>
    %17 = arith.addf %14, %16 : vector<2x128xf32>
    %c0_15 = arith.constant 0 : index
    %c0_16 = arith.constant 0 : index
    %18 = vector.load %arg8[%c0_15, %c0_16] : memref<2x128xf32, #tpu.memory_space<vmem>>, vector<2x128xf32>
    tpu.vector_store %arg8[%c0_15, %c0_16], %17 {strides = array<i32>} : memref<2x128xf32, #tpu.memory_space<vmem>>, vector<2x128xf32>,
    return
  }
  func.func @transform_0(%arg0: i32) -> (i32, i32) {
    %c0_i32 = arith.constant 0 : i32
    %c0_i32_0 = arith.constant 0 : i32
    return %c0_i32, %arg0 : i32, i32
  }
  func.func @transform_1(%arg0: i32) -> (i32, i32) {
    %c0_i32 = arith.constant 0 : i32
    %c0_i32_0 = arith.constant 0 : i32
    return %arg0, %c0_i32 : i32, i32
  }
  func.func @transform_2(%arg0: i32) -> (i32, i32) {
    %c0_i32 = arith.constant 0 : i32
    %c0_i32_0 = arith.constant 0 : i32
    %c0_i32_1 = arith.constant 0 : i32
    return %c0_i32, %c0_i32_0 : i32, i32
  }
  func.func @transform_3(%arg0: i32) -> (i32, i32) {
    %c0_i32 = arith.constant 0 : i32
    %c0_i32_0 = arith.constant 0 : i32
    %c0_i32_1 = arith.constant 0 : i32
    return %c0_i32, %c0_i32_0 : i32, i32
  }
  func.func @transform_4(%arg0: i32) -> (i32, i32) {
    %c0_i32 = arith.constant 0 : i32
    %c0_i32_0 = arith.constant 0 : i32
    %c0_i32_1 = arith.constant 0 : i32
    return %c0_i32, %c0_i32_0 : i32, i32
  }
  func.func @transform_5(%arg0: i32) -> (i32, i32) {
    %c0_i32 = arith.constant 0 : i32
    %c0_i32_0 = arith.constant 0 : i32
    %c0_i32_1 = arith.constant 0 : i32
    return %c0_i32, %c0_i32_0 : i32, i32
  }
  func.func @transform_6(%arg0: i32) -> (i32, i32) {
    %c0_i32 = arith.constant 0 : i32
    %c0_i32_0 = arith.constant 0 : i32
    %c0_i32_1 = arith.constant 0 : i32
    return %c0_i32, %c0_i32_0 : i32, i32
  }
  func.func @transform_7(%arg0: i32) -> (i32, i32) {
    %c0_i32 = arith.constant 0 : i32
    %c0_i32_0 = arith.constant 0 : i32
    %c0_i32_1 = arith.constant 0 : i32
    return %c0_i32, %c0_i32_0 : i32, i32
  }
}

</mosaic_0001>

<llo_original>
// kernel: policy_forward.1
$region0: #{policy_forward.1}
  #allocation0 [shape = 'u32[]', space=smem, size = 0x4, offset = 0x4, fixed_abs, tag = 'smem constant byte address 0x4 - core index']
  #allocation1 [shape = 'u32[72,128]{1,0:T(1,128)}', space=vmem, size = 0x9000, scoped, tag = 'internal scratch']
  %s0 = inlined_call_operand.vmem [shape: bf16[2,640], index: 0, kind: input, shape index: {}]
  %s1 = inlined_call_operand.hbm [shape: bf16[640,128], index: 1, kind: input, shape index: {}]
  %s2 = inlined_call_operand.vmem [shape: f32[1,128], index: 2, kind: input, shape index: {}]
  %s3 = inlined_call_operand.hbm [shape: f32[128,128], index: 3, kind: input, shape index: {}]
  %s4 = inlined_call_operand.vmem [shape: f32[1,128], index: 4, kind: input, shape index: {}]
  %s5 = inlined_call_operand.hbm [shape: f32[128,128], index: 5, kind: input, shape index: {}]
  %s6 = inlined_call_operand.vmem [shape: f32[1,128], index: 6, kind: input, shape index: {}]
  %s7 = inlined_call_operand.vmem [shape: f32[2,128], index: 7, kind: output, shape index: {}]
  %s8 = sld [smem:[#allocation0]]
  $region50: #{policy_forward.1} parent=0
    _
  %s10 = ssub.s32 1, %s8
  %s11 = scalar_select 0, %s10, %s8
  $region1: #{policy_forward.1} parent=0
    #allocation2 [shape = 'u8[163840]{0}', space=vmem, size = 0x28000, scoped, tag = 'input window, operand 1, single buffered']
    #allocation3 [shape = 's32[1]{0}', space=sflag, size = 0x4, scoped, tag = 'scoped memory for policy_forward.1']
    #allocation4 [shape = 'u8[65536]{0}', space=vmem, size = 0x10000, scoped, tag = 'input window, operand 3, single buffered']
    #allocation5 [shape = 's32[1]{0}', space=sflag, size = 0x4, scoped, tag = 'scoped memory for policy_forward.1']
    #allocation6 [shape = 'u8[65536]{0}', space=vmem, size = 0x10000, scoped, tag = 'input window, operand 5, single buffered']
    %12 = vsyncpa [#allocation3], 0
    %13 = vsyncpa [#allocation5], 0
    // Predicated region
    $region2: #{policy_forward.1} parent=1 // pred_check
      _
    $region3: #{policy_forward.1} parent=1 // pred_check_branch
      %15 = sbr.rel (0) target = $region5
    $region4: #{policy_forward.1} parent=1 // pred_region
      _
    $region5: #{policy_forward.1} parent=1 // pred_fallthru
      _
    // Predicated region
    $region6: #{policy_forward.1} parent=1 // pred_check
      _
    $region7: #{policy_forward.1} parent=1 // pred_check_branch
      %17 = sbr.rel (0) target = $region9
    $region8: #{policy_forward.1} parent=1 // pred_region
      %19 = vsyncadd [#allocation3], 0
      %s20 = sshll.u32 %s1, 4
      %s21 = int_to_ptr.hbm [resolvable:$true] %s20
      %s22 = sshll.u32 [#allocation2], 4
      %s23 = int_to_ptr.vmem [resolvable:$true] %s22
      %28 = dma.hbm_to_vmem [thread:$0]  %s21, 5120, %s23, [#allocation3], 64, 64, 4
    $region9: #{policy_forward.1} parent=1 // pred_fallthru
      _
    // Predicated region
    $region10: #{policy_forward.1} parent=1 // pred_check
      _
    $region11: #{policy_forward.1} parent=1 // pred_check_branch
      %30 = sbr.rel (0) target = $region13
    $region12: #{policy_forward.1} parent=1 // pred_region
      _
    $region13: #{policy_forward.1} parent=1 // pred_fallthru
      _
    // Predicated region
    $region14: #{policy_forward.1} parent=1 // pred_check
      _
    $region15: #{policy_forward.1} parent=1 // pred_check_branch
      %32 = sbr.rel (0) target = $region17
    $region16: #{policy_forward.1} parent=1 // pred_region
      %34 = vsyncadd [#allocation5], 0
      %s35 = sshll.u32 %s3, 4
      %s36 = int_to_ptr.hbm [resolvable:$true] %s35
      %s37 = sshll.u32 [#allocation4], 4
      %s38 = int_to_ptr.vmem [resolvable:$true] %s37
      %43 = dma.hbm_to_vmem [thread:$0]  %s36, 2048, %s38, [#allocation5], 128, 128, 8
    $region17: #{policy_forward.1} parent=1 // pred_fallthru
      _
    // Predicated region
    $region18: #{policy_forward.1} parent=1 // pred_check
      _
    $region19: #{policy_forward.1} parent=1 // pred_check_branch
      %45 = sbr.rel (0) target = $region21
    $region20: #{policy_forward.1} parent=1 // pred_region
      _
    $region21: #{policy_forward.1} parent=1 // pred_fallthru
      _
    // Predicated region
    $region22: #{policy_forward.1} parent=1 // pred_check
      _
    $region23: #{policy_forward.1} parent=1 // pred_check_branch
      %47 = sbr.rel (0) target = $region25
    $region24: #{policy_forward.1} parent=1 // pred_region
      %49 = vsyncadd [#allocation5], 0
      %s50 = sshll.u32 %s5, 4
      %s51 = int_to_ptr.hbm [resolvable:$true] %s50
      %s52 = sshll.u32 [#allocation6], 4
      %s53 = int_to_ptr.vmem [resolvable:$true] %s52
      %58 = dma.hbm_to_vmem [thread:$0]  %s51, 2048, %s53, [#allocation5], 128, 128, 8
    $region25: #{policy_forward.1} parent=1 // pred_fallthru
      _
    // Predicated region
    $region26: #{policy_forward.1} parent=1 // pred_check
      _
    $region27: #{policy_forward.1} parent=1 // pred_check_branch
      %60 = sbr.rel (0) target = $region29
    $region28: #{policy_forward.1} parent=1 // pred_region
      _
    $region29: #{policy_forward.1} parent=1 // pred_fallthru
      _
    // Predicated region
    $region30: #{policy_forward.1} parent=1 // pred_check
      _
    $region31: #{policy_forward.1} parent=1 // pred_check_branch
      %62 = sbr.rel (0) target = $region33
    $region32: #{policy_forward.1} parent=1 // pred_region
      %64 = dma.done [#allocation3], 5120
    $region33: #{policy_forward.1} parent=1 // pred_fallthru
      _
    // Predicated region
    $region34: #{policy_forward.1} parent=1 // pred_check
      _
    $region35: #{policy_forward.1} parent=1 // pred_check_branch
      %66 = sbr.rel (0) target = $region37
    $region36: #{policy_forward.1} parent=1 // pred_region
      %68 = dma.done [#allocation5], 2048
    $region37: #{policy_forward.1} parent=1 // pred_fallthru
      _
    // Predicated region
    $region38: #{policy_forward.1} parent=1 // pred_check
      _
    $region39: #{policy_forward.1} parent=1 // pred_check_branch
      %70 = sbr.rel (0) target = $region41
    $region40: #{policy_forward.1} parent=1 // pred_region
      %72 = dma.done [#allocation5], 2048
    $region41: #{policy_forward.1} parent=1 // pred_fallthru
      _
    %v73 = vld [vmem:[%s0] sm:$0x1f]
    %v74 = vld [vmem:[#allocation2] sm:$0xf]
    %v75 = vld [vmem:[#allocation2 + $0x4] sm:$0xf]
    %v76 = vld [vmem:[#allocation2 + $0x8] sm:$0xf]
    %v77 = vld [vmem:[#allocation2 + $0xc] sm:$0xf]
    %v78 = vld [vmem:[#allocation2 + $0x10] sm:$0xf]
    %v79 = vld [vmem:[#allocation2 + $0x14] sm:$0xf]
    %v80 = vld [vmem:[#allocation2 + $0x18] sm:$0xf]
    %v81 = vld [vmem:[#allocation2 + $0x1c] sm:$0xf]
    %v82 = vld [vmem:[#allocation2 + $0x20] sm:$0xf]
    %v83 = vld [vmem:[#allocation2 + $0x24] sm:$0xf]
    %v84 = vld [vmem:[#allocation2 + $0x28] sm:$0xf]
    %v85 = vld [vmem:[#allocation2 + $0x2c] sm:$0xf]
    %v86 = vld [vmem:[#allocation2 + $0x30] sm:$0xf]
    %v87 = vld [vmem:[#allocation2 + $0x34] sm:$0xf]
    %v88 = vld [vmem:[#allocation2 + $0x38] sm:$0xf]
    %v89 = vld [vmem:[#allocation2 + $0x3c] sm:$0xf]
    %v90 = vld [vmem:[#allocation2 + $0x40] sm:$0xf]
    %v91 = vld [vmem:[#allocation2 + $0x44] sm:$0xf]
    %v92 = vld [vmem:[#allocation2 + $0x48] sm:$0xf]
    %v93 = vld [vmem:[#allocation2 + $0x4c] sm:$0xf]
    %v94 = vld [vmem:[#allocation2 + $0x50] sm:$0xf]
    %v95 = vld [vmem:[#allocation2 + $0x54] sm:$0xf]
    %v96 = vld [vmem:[#allocation2 + $0x58] sm:$0xf]
    %v97 = vld [vmem:[#allocation2 + $0x5c] sm:$0xf]
    %v98 = vld [vmem:[#allocation2 + $0x60] sm:$0xf]
    %v99 = vld [vmem:[#allocation2 + $0x64] sm:$0xf]
    %v100 = vld [vmem:[#allocation2 + $0x68] sm:$0xf]
    %v101 = vld [vmem:[#allocation2 + $0x6c] sm:$0xf]
    %v102 = vld [vmem:[#allocation2 + $0x70] sm:$0xf]
    %v103 = vld [vmem:[#allocation2 + $0x74] sm:$0xf]
    %v104 = vld [vmem:[#allocation2 + $0x78] sm:$0xf]
    %v105 = vld [vmem:[#allocation2 + $0x7c] sm:$0xf]
    %v106 = vld [vmem:[#allocation2 + $0x80] sm:$0xf]
    %v107 = vld [vmem:[#allocation2 + $0x84] sm:$0xf]
    %v108 = vld [vmem:[#allocation2 + $0x88] sm:$0xf]
    %v109 = vld [vmem:[#allocation2 + $0x8c] sm:$0xf]
    %v110 = vld [vmem:[#allocation2 + $0x90] sm:$0xf]
    %v111 = vld [vmem:[#allocation2 + $0x94] sm:$0xf]
    %v112 = vld [vmem:[#allocation2 + $0x98] sm:$0xf]
    %v113 = vld [vmem:[#allocation2 + $0x9c] sm:$0xf]
    %v114 = vld [vmem:[#allocation2 + $0xa0] sm:$0xf]
    %v115 = vld [vmem:[#allocation2 + $0xa4] sm:$0xf]
    %v116 = vld [vmem:[#allocation2 + $0xa8] sm:$0xf]
    %v117 = vld [vmem:[#allocation2 + $0xac] sm:$0xf]
    %v118 = vld [vmem:[#allocation2 + $0xb0] sm:$0xf]
    %v119 = vld [vmem:[#allocation2 + $0xb4] sm:$0xf]
    %v120 = vld [vmem:[#allocation2 + $0xb8] sm:$0xf]
    %v121 = vld [vmem:[#allocation2 + $0xbc] sm:$0xf]
    %v122 = vld [vmem:[#allocation2 + $0xc0] sm:$0xf]
    %v123 = vld [vmem:[#allocation2 + $0xc4] sm:$0xf]
    %v124 = vld [vmem:[#allocation2 + $0xc8] sm:$0xf]
    %v125 = vld [vmem:[#allocation2 + $0xcc] sm:$0xf]
    %v126 = vld [vmem:[#allocation2 + $0xd0] sm:$0xf]
    %v127 = vld [vmem:[#allocation2 + $0xd4] sm:$0xf]
    %v128 = vld [vmem:[#allocation2 + $0xd8] sm:$0xf]
    %v129 = vld [vmem:[#allocation2 + $0xdc] sm:$0xf]
    %v130 = vld [vmem:[#allocation2 + $0xe0] sm:$0xf]
    %v131 = vld [vmem:[#allocation2 + $0xe4] sm:$0xf]
    %v132 = vld [vmem:[#allocation2 + $0xe8] sm:$0xf]
    %v133 = vld [vmem:[#allocation2 + $0xec] sm:$0xf]
    %v134 = vld [vmem:[#allocation2 + $0xf0] sm:$0xf]
    %v135 = vld [vmem:[#allocation2 + $0xf4] sm:$0xf]
    %v136 = vld [vmem:[#allocation2 + $0xf8] sm:$0xf]
    %v137 = vld [vmem:[#allocation2 + $0xfc] sm:$0xf]
    %v138 = vld [vmem:[#allocation2 + $0x100] sm:$0xf]
    %v139 = vld [vmem:[#allocation2 + $0x104] sm:$0xf]
    %v140 = vld [vmem:[#allocation2 + $0x108] sm:$0xf]
    %v141 = vld [vmem:[#allocation2 + $0x10c] sm:$0xf]
    %v142 = vld [vmem:[#allocation2 + $0x110] sm:$0xf]
    %v143 = vld [vmem:[#allocation2 + $0x114] sm:$0xf]
    %v144 = vld [vmem:[#allocation2 + $0x118] sm:$0xf]
    %v145 = vld [vmem:[#allocation2 + $0x11c] sm:$0xf]
    %v146 = vld [vmem:[#allocation2 + $0x120] sm:$0xf]
    %v147 = vld [vmem:[#allocation2 + $0x124] sm:$0xf]
    %v148 = vld [vmem:[#allocation2 + $0x128] sm:$0xf]
    %v149 = vld [vmem:[#allocation2 + $0x12c] sm:$0xf]
    %v150 = vld [vmem:[#allocation2 + $0x130] sm:$0xf]
    %v151 = vld [vmem:[#allocation2 + $0x134] sm:$0xf]
    %v152 = vld [vmem:[#allocation2 + $0x138] sm:$0xf]
    %v153 = vld [vmem:[#allocation2 + $0x13c] sm:$0xf]
    %v154 = vld [vmem:[%s2] sm:$0x1]
    %v156 = vperm.slane %v154, 0
    %159 = vst [vmem:[#allocation1] ss:$9 sm:$0xff] %v73
    %v160 = vld [vmem:[#allocation1] sm:$0xff]
    %v161 = vld [vmem:[#allocation1 + $0x9] sm:$0xff]
    %v162 = vld [vmem:[#allocation1 + $0x12] sm:$0xff]
    %v163 = vld [vmem:[#allocation1 + $0x1b] sm:$0xff]
    %v164 = vld [vmem:[#allocation1 + $0x24] sm:$0xff]
    %v250 = vunpack.c.l.b16 %v74
    %v251 = vunpack.c.l.b16 %v75
    %v252 = vunpack.c.l.b16 %v76
    %v253 = vunpack.c.l.b16 %v77
    %v254 = vunpack.c.l.b16 %v78
    %v255 = vunpack.c.l.b16 %v79
    %v256 = vunpack.c.l.b16 %v80
    %v257 = vunpack.c.l.b16 %v81
    %v258 = vunpack.c.l.b16 %v82
    %v259 = vunpack.c.l.b16 %v83
    %v260 = vunpack.c.l.b16 %v84
    %v261 = vunpack.c.l.b16 %v85
    %v262 = vunpack.c.l.b16 %v86
    %v263 = vunpack.c.l.b16 %v87
    %v264 = vunpack.c.l.b16 %v88
    %v265 = vunpack.c.l.b16 %v89
    %v266 = vunpack.c.l.b16 %v90
    %v267 = vunpack.c.l.b16 %v91
    %v268 = vunpack.c.l.b16 %v92
    %v269 = vunpack.c.l.b16 %v93
    %v270 = vunpack.c.l.b16 %v94
    %v271 = vunpack.c.l.b16 %v95
    %v272 = vunpack.c.l.b16 %v96
    %v273 = vunpack.c.l.b16 %v97
    %v274 = vunpack.c.l.b16 %v98
    %v275 = vunpack.c.l.b16 %v99
    %v276 = vunpack.c.l.b16 %v100
    %v277 = vunpack.c.l.b16 %v101
    %v278 = vunpack.c.l.b16 %v102
    %v279 = vunpack.c.l.b16 %v103
    %v280 = vunpack.c.l.b16 %v104
    %v281 = vunpack.c.l.b16 %v105
    %v282 = vunpack.c.l.b16 %v106
    %v283 = vunpack.c.l.b16 %v107
    %v284 = vunpack.c.l.b16 %v108
    %v285 = vunpack.c.l.b16 %v109
    %v286 = vunpack.c.l.b16 %v110
    %v287 = vunpack.c.l.b16 %v111
    %v288 = vunpack.c.l.b16 %v112
    %v289 = vunpack.c.l.b16 %v113
    %v290 = vunpack.c.l.b16 %v114
    %v291 = vunpack.c.l.b16 %v115
    %v292 = vunpack.c.l.b16 %v116
    %v293 = vunpack.c.l.b16 %v117
    %v294 = vunpack.c.l.b16 %v118
    %v295 = vunpack.c.l.b16 %v119
    %v296 = vunpack.c.l.b16 %v120
    %v297 = vunpack.c.l.b16 %v121
    %v298 = vunpack.c.l.b16 %v122
    %v299 = vunpack.c.l.b16 %v123
    %v300 = vunpack.c.l.b16 %v124
    %v301 = vunpack.c.l.b16 %v125
    %v302 = vunpack.c.l.b16 %v126
    %v303 = vunpack.c.l.b16 %v127
    %v304 = vunpack.c.l.b16 %v128
    %v305 = vunpack.c.l.b16 %v129
    %v306 = vunpack.c.l.b16 %v130
    %v307 = vunpack.c.l.b16 %v131
    %v308 = vunpack.c.l.b16 %v132
    %v309 = vunpack.c.l.b16 %v133
    %v310 = vunpack.c.l.b16 %v134
    %v311 = vunpack.c.l.b16 %v135
    %v312 = vunpack.c.l.b16 %v136
    %v313 = vunpack.c.l.b16 %v137
    %v314 = vunpack.c.l.b16 %v138
    %v315 = vunpack.c.l.b16 %v139
    %v316 = vunpack.c.l.b16 %v140
    %v317 = vunpack.c.l.b16 %v141
    %v318 = vunpack.c.l.b16 %v142
    %v319 = vunpack.c.l.b16 %v143
    %v320 = vunpack.c.l.b16 %v144
    %v321 = vunpack.c.l.b16 %v145
    %v322 = vunpack.c.l.b16 %v146
    %v323 = vunpack.c.l.b16 %v147
    %v324 = vunpack.c.l.b16 %v148
    %v325 = vunpack.c.l.b16 %v149
    %v326 = vunpack.c.l.b16 %v150
    %v327 = vunpack.c.l.b16 %v151
    %v328 = vunpack.c.l.b16 %v152
    %v329 = vunpack.c.l.b16 %v153
    %v330 = vpack.c.b16 %v251, %v250
    %v331 = vpack.c.b16 %v253, %v252
    %v332 = vpack.c.b16 %v255, %v254
    %v333 = vpack.c.b16 %v257, %v256
    %v334 = vpack.c.b16 %v259, %v258
    %v335 = vpack.c.b16 %v261, %v260
    %v336 = vpack.c.b16 %v263, %v262
    %v337 = vpack.c.b16 %v265, %v264
    %v338 = vpack.c.b16 %v267, %v266
    %v339 = vpack.c.b16 %v269, %v268
    %v340 = vpack.c.b16 %v271, %v270
    %v341 = vpack.c.b16 %v273, %v272
    %v342 = vpack.c.b16 %v275, %v274
    %v343 = vpack.c.b16 %v277, %v276
    %v344 = vpack.c.b16 %v279, %v278
    %v345 = vpack.c.b16 %v281, %v280
    %v346 = vpack.c.b16 %v283, %v282
    %v347 = vpack.c.b16 %v285, %v284
    %v348 = vpack.c.b16 %v287, %v286
    %v349 = vpack.c.b16 %v289, %v288
    %v350 = vpack.c.b16 %v291, %v290
    %v351 = vpack.c.b16 %v293, %v292
    %v352 = vpack.c.b16 %v295, %v294
    %v353 = vpack.c.b16 %v297, %v296
    %v354 = vpack.c.b16 %v299, %v298
    %v355 = vpack.c.b16 %v301, %v300
    %v356 = vpack.c.b16 %v303, %v302
    %v357 = vpack.c.b16 %v305, %v304
    %v358 = vpack.c.b16 %v307, %v306
    %v359 = vpack.c.b16 %v309, %v308
    %v360 = vpack.c.b16 %v311, %v310
    %v361 = vpack.c.b16 %v313, %v312
    %v362 = vpack.c.b16 %v315, %v314
    %v363 = vpack.c.b16 %v317, %v316
    %v364 = vpack.c.b16 %v319, %v318
    %v365 = vpack.c.b16 %v321, %v320
    %v366 = vpack.c.b16 %v323, %v322
    %v367 = vpack.c.b16 %v325, %v324
    %v368 = vpack.c.b16 %v327, %v326
    %v369 = vpack.c.b16 %v329, %v328
    %410 = vmatpush.bf16.msra.mxu0 %v337
    %411 = vmatpush.bf16.msra.mxu0 %v336
    %412 = vmatpush.bf16.msra.mxu0 %v335
    %413 = vmatpush.bf16.msra.mxu0 %v334
    %414 = vmatpush.bf16.msra.mxu0 %v333
    %415 = vmatpush.bf16.msra.mxu0 %v332
    %416 = vmatpush.bf16.msra.mxu0 %v331
    %417 = vmatpush.bf16.msra.mxu0 %v330
    %418 = vmatmul.bf16.gmra.mxu0 %v160
    %v419 = vpop.f32.mrf.mxu0
    %v420 = vadd.f32 %v156, %v419
    %v421 = vpop.f32.mrf.mxu0
    %422 = vdwg.mxu0
    %423 = vmatpush.bf16.msra.mxu0 %v345
    %424 = vmatpush.bf16.msra.mxu0 %v344
    %425 = vmatpush.bf16.msra.mxu0 %v343
    %426 = vmatpush.bf16.msra.mxu0 %v342
    %427 = vmatpush.bf16.msra.mxu0 %v341
    %428 = vmatpush.bf16.msra.mxu0 %v340
    %429 = vmatpush.bf16.msra.mxu0 %v339
    %430 = vmatpush.bf16.msra.mxu0 %v338
    %431 = vmatmul.bf16.gmra.mxu0 %v161
    %v432 = vpop.f32.mrf.mxu0
    %v433 = vadd.f32 %v420, %v432
    %v434 = vpop.f32.mrf.mxu0
    %435 = vdwg.mxu0
    %436 = vmatpush.bf16.msra.mxu0 %v353
    %437 = vmatpush.bf16.msra.mxu0 %v352
    %438 = vmatpush.bf16.msra.mxu0 %v351
    %439 = vmatpush.bf16.msra.mxu0 %v350
    %440 = vmatpush.bf16.msra.mxu0 %v349
    %441 = vmatpush.bf16.msra.mxu0 %v348
    %442 = vmatpush.bf16.msra.mxu0 %v347
    %443 = vmatpush.bf16.msra.mxu0 %v346
    %444 = vmatmul.bf16.gmra.mxu0 %v162
    %v445 = vpop.f32.mrf.mxu0
    %v446 = vadd.f32 %v433, %v445
    %v447 = vpop.f32.mrf.mxu0
    %448 = vdwg.mxu0
    %449 = vmatpush.bf16.msra.mxu0 %v361
    %450 = vmatpush.bf16.msra.mxu0 %v360
    %451 = vmatpush.bf16.msra.mxu0 %v359
    %452 = vmatpush.bf16.msra.mxu0 %v358
    %453 = vmatpush.bf16.msra.mxu0 %v357
    %454 = vmatpush.bf16.msra.mxu0 %v356
    %455 = vmatpush.bf16.msra.mxu0 %v355
    %456 = vmatpush.bf16.msra.mxu0 %v354
    %457 = vmatmul.bf16.gmra.mxu0 %v163
    %v458 = vpop.f32.mrf.mxu0
    %v459 = vadd.f32 %v446, %v458
    %v460 = vpop.f32.mrf.mxu0
    %461 = vdwg.mxu0
    %462 = vmatpush.bf16.msra.mxu0 %v369
    %463 = vmatpush.bf16.msra.mxu0 %v368
    %464 = vmatpush.bf16.msra.mxu0 %v367
    %465 = vmatpush.bf16.msra.mxu0 %v366
    %466 = vmatpush.bf16.msra.mxu0 %v365
    %467 = vmatpush.bf16.msra.mxu0 %v364
    %468 = vmatpush.bf16.msra.mxu0 %v363
    %469 = vmatpush.bf16.msra.mxu0 %v362
    %470 = vmatmul.bf16.gmra.mxu0 %v164
    %v471 = vpop.f32.mrf.mxu0
    %v472 = vadd.f32 %v459, %v471
    %v473 = vpop.f32.mrf.mxu0
    %474 = vdwg.mxu0
    %v475 = vtanh.pop %v472
    %v476 = vld [vmem:[#allocation4] sm:$0xff]
    %v477 = vld [vmem:[#allocation4 + $0x8] sm:$0xff]
    %v478 = vld [vmem:[#allocation4 + $0x10] sm:$0xff]
    %v479 = vld [vmem:[#allocation4 + $0x18] sm:$0xff]
    %v480 = vld [vmem:[#allocation4 + $0x20] sm:$0xff]
    %v481 = vld [vmem:[#allocation4 + $0x28] sm:$0xff]
    %v482 = vld [vmem:[#allocation4 + $0x30] sm:$0xff]
    %v483 = vld [vmem:[#allocation4 + $0x38] sm:$0xff]
    %v484 = vld [vmem:[#allocation4 + $0x40] sm:$0xff]
    %v485 = vld [vmem:[#allocation4 + $0x48] sm:$0xff]
    %v486 = vld [vmem:[#allocation4 + $0x50] sm:$0xff]
    %v487 = vld [vmem:[#allocation4 + $0x58] sm:$0xff]
    %v488 = vld [vmem:[#allocation4 + $0x60] sm:$0xff]
    %v489 = vld [vmem:[#allocation4 + $0x68] sm:$0xff]
    %v490 = vld [vmem:[#allocation4 + $0x70] sm:$0xff]
    %v491 = vld [vmem:[#allocation4 + $0x78] sm:$0xff]
    %v492 = vld [vmem:[%s4] sm:$0x1]
    %v494 = vperm.slane %v492, 0
    %496 = vmatpush.msra.mxu0 %v491
    %497 = vmatpush.msra.mxu0 %v490
    %498 = vmatpush.msra.mxu0 %v489
    %499 = vmatpush.msra.mxu0 %v488
    %500 = vmatpush.msra.mxu0 %v487
    %501 = vmatpush.msra.mxu0 %v486
    %502 = vmatpush.msra.mxu0 %v485
    %503 = vmatpush.msra.mxu0 %v484
    %504 = vmatpush.msra.mxu0 %v483
    %505 = vmatpush.msra.mxu0 %v482
    %506 = vmatpush.msra.mxu0 %v481
    %507 = vmatpush.msra.mxu0 %v480
    %508 = vmatpush.msra.mxu0 %v479
    %509 = vmatpush.msra.mxu0 %v478
    %510 = vmatpush.msra.mxu0 %v477
    %511 = vmatpush.msra.mxu0 %v476
    %512 = vmatmul.f32.gmra.mxu0 %v475
    %v513 = vpop.f32.mrf.mxu0
    %v514 = vadd.f32 %v494, %v513
    %515 = vdwg.mxu0
    %v516 = vtanh.pop %v514
    %v517 = vld [vmem:[#allocation6] sm:$0xff]
    %v518 = vld [vmem:[#allocation6 + $0x8] sm:$0xff]
    %v519 = vld [vmem:[#allocation6 + $0x10] sm:$0xff]
    %v520 = vld [vmem:[#allocation6 + $0x18] sm:$0xff]
    %v521 = vld [vmem:[#allocation6 + $0x20] sm:$0xff]
    %v522 = vld [vmem:[#allocation6 + $0x28] sm:$0xff]
    %v523 = vld [vmem:[#allocation6 + $0x30] sm:$0xff]
    %v524 = vld [vmem:[#allocation6 + $0x38] sm:$0xff]
    %v525 = vld [vmem:[#allocation6 + $0x40] sm:$0xff]
    %v526 = vld [vmem:[#allocation6 + $0x48] sm:$0xff]
    %v527 = vld [vmem:[#allocation6 + $0x50] sm:$0xff]
    %v528 = vld [vmem:[#allocation6 + $0x58] sm:$0xff]
    %v529 = vld [vmem:[#allocation6 + $0x60] sm:$0xff]
    %v530 = vld [vmem:[#allocation6 + $0x68] sm:$0xff]
    %v531 = vld [vmem:[#allocation6 + $0x70] sm:$0xff]
    %v532 = vld [vmem:[#allocation6 + $0x78] sm:$0xff]
    %v533 = vld [vmem:[%s6] sm:$0x1]
    %v535 = vperm.slane %v533, 0
    %537 = vmatpush.msra.mxu0 %v532
    %538 = vmatpush.msra.mxu0 %v531
    %539 = vmatpush.msra.mxu0 %v530
    %540 = vmatpush.msra.mxu0 %v529
    %541 = vmatpush.msra.mxu0 %v528
    %542 = vmatpush.msra.mxu0 %v527
    %543 = vmatpush.msra.mxu0 %v526
    %544 = vmatpush.msra.mxu0 %v525
    %545 = vmatpush.msra.mxu0 %v524
    %546 = vmatpush.msra.mxu0 %v523
    %547 = vmatpush.msra.mxu0 %v522
    %548 = vmatpush.msra.mxu0 %v521
    %549 = vmatpush.msra.mxu0 %v520
    %550 = vmatpush.msra.mxu0 %v519
    %551 = vmatpush.msra.mxu0 %v518
    %552 = vmatpush.msra.mxu0 %v517
    %553 = vmatmul.f32.gmra.mxu0 %v516
    %v554 = vpop.f32.mrf.mxu0
    %v555 = vadd.f32 %v535, %v554
    %556 = vdwg.mxu0
    %557 = vst [vmem:[%s7] sm:$0x3] %v555
    // Predicated region
    $region42: #{policy_forward.1} parent=1 // pred_check
      _
    $region43: #{policy_forward.1} parent=1 // pred_check_branch
      %559 = sbr.rel (0) target = $region45
    $region44: #{policy_forward.1} parent=1 // pred_region
      _
    $region45: #{policy_forward.1} parent=1 // pred_fallthru
      _
    // Predicated region
    $region46: #{policy_forward.1} parent=1 // pred_check
      _
    $region47: #{policy_forward.1} parent=1 // pred_check_branch
      %561 = sbr.rel (0) target = $region49
    $region48: #{policy_forward.1} parent=1 // pred_region
      _
    $region49: #{policy_forward.1} parent=1 // pred_fallthru
      _
    %562 = vsyncpa [#allocation3], 1
    %563 = vsyncpa [#allocation5], 1

</llo_original>
